<compile_context>
chip_gen: v7x
topology: tpu7x:2x2x1
jax: 0.10.0
libtpu: 0.0.40
codegen_flags: <defaults>
</compile_context>

<pallas_src>
import functools

import jax
import jax.numpy as jnp
from jax import lax
from jax.experimental import pallas as pl
from jax.experimental.pallas import tpu as pltpu


_TM_CAP = 512   # sublane-dim tile cap (batch)
_TN_CAP = 512   # lane-dim tile cap (out_features)
_TK_CAP = 1024  # reduction tile cap (in_features)


def _round_up(x: int, m: int) -> int:
    return (x + m - 1) // m * m


def _pick_tile(dim: int, cap: int, align: int):
    """Largest tile (multiple of `align`, <= cap) that minimises padding of `dim`.

    Returns (tile, padded_dim).  Divisor tiles are preferred so the common
    128-aligned layer shapes need no padding at all.
    """
    dim_a = _round_up(max(dim, 1), align)
    best_t, best_pad = align, dim_a
    t = 2 * align
    while t <= min(cap, dim_a):
        pad = _round_up(dim_a, t)
        if pad < best_pad or (pad == best_pad and t > best_t):
            best_t, best_pad = t, pad
        t += align
    return best_t, best_pad


def _vmem_limit_bytes() -> int:
    """VMEM budget adapted to the chip generation (v5e/v6e: 128 MiB, v7x: 64 MiB)."""
    limit = 48 * 1024 * 1024  # conservative default, safe on every generation
    try:
        cap = getattr(pltpu.get_tpu_info(), "vmem_capacity_bytes", None)
        if cap:
            limit = int(min(cap * 3 // 4, 100 * 1024 * 1024))
    except Exception:
        pass
    return limit


def _linear_relu_kernel(x_ref, w_ref, b_ref, o_ref):
    k = pl.program_id(2)

    @pl.when(k == 0)
    def _init():
        # Start from the bias so the last K step only needs the ReLU.
        o_ref[...] = jnp.broadcast_to(b_ref[...], o_ref.shape)

    # x block: (tm, tk), w block: (tn, tk) -> contract last dims on the MXU.
    # Accumulate straight into the resident f32 output block.
    o_ref[...] += lax.dot_general(
        x_ref[...], w_ref[...],
        dimension_numbers=(((1,), (1,)), ((), ())),
        preferred_element_type=jnp.float32)

    @pl.when(k == pl.num_programs(2) - 1)
    def _relu():
        o_ref[...] = jnp.maximum(o_ref[...], 0.0)


@functools.partial(jax.jit, static_argnums=(3, 4, 5))
def _linear_relu_padded(x, w_pad, b_pad, n_out, tn, tk):
    """relu(x @ w_pad.T + b_pad) with pre-padded (n_pad, k_pad) weight.

    x:     (m, k)        float32
    w_pad: (n_pad, k_pad) float32 (PyTorch (out,in) layout, zero padded)
    b_pad: (1, n_pad)     float32 (zero padded)
    """
    m, k = x.shape
    n_pad, k_pad = w_pad.shape
    x = x.astype(jnp.float32)

    # Activation-only padding along K (zeros contribute nothing to the dot);
    # a no-op for 128-aligned layers.
    if k_pad != k:
        x = jnp.pad(x, ((0, 0), (0, k_pad - k)))

    tm, m_pad = _pick_tile(m, _TM_CAP, 8)

    # Give both TensorCores work on multi-core chips (v7x) when the parallel
    # grid would otherwise be 1x1; negligible cost on 1-TC chips.
    if m_pad // tm == 1 and n_pad // tn == 1 and tm >= 16 and tm % 16 == 0:
        tm //= 2

    if m_pad != m:
        x = jnp.pad(x, ((0, m_pad - m), (0, 0)))

    grid = (m_pad // tm, n_pad // tn, k_pad // tk)

    cost = pl.CostEstimate(
        flops=2 * m * n_out * k,
        transcendentals=0,
        bytes_accessed=4 * (m_pad * k_pad * grid[1]     # x streamed once per N block
                            + n_pad * k_pad * grid[0]   # weight streamed once per M block
                            + n_pad                     # bias
                            + m_pad * n_pad),           # output write
    )

    out = pl.pallas_call(
        _linear_relu_kernel,
        out_shape=jax.ShapeDtypeStruct((m_pad, n_pad), jnp.float32),
        grid_spec=pltpu.PrefetchScalarGridSpec(
            num_scalar_prefetch=0,
            grid=grid,
            in_specs=[
                pl.BlockSpec((tm, tk), lambda i, j, kk: (i, kk)),   # x
                pl.BlockSpec((tn, tk), lambda i, j, kk: (j, kk)),   # weight (N, K)
                pl.BlockSpec((1, tn), lambda i, j, kk: (0, j)),     # bias
            ],
            out_specs=pl.BlockSpec((tm, tn), lambda i, j, kk: (i, j)),
        ),
        compiler_params=pltpu.CompilerParams(
            dimension_semantics=("parallel", "parallel", "arbitrary"),
            vmem_limit_bytes=_vmem_limit_bytes(),
        ),
        cost_estimate=cost,
    )(x, w_pad, b_pad)

    if (m_pad, n_pad) != (m, n_out):
        out = out[:m, :n_out]
    return out


class PallasLinearReLU:
    """relu(x @ weight.T + bias), weight in PyTorch (out_features, in_features) layout.

    Weight and bias are zero-padded to tile-aligned shapes once at construction
    (they are static per layer), so the jitted per-call path never re-pads the
    parameters.
    """

    def __init__(self, weight: jax.Array, bias: jax.Array):
        n, k = weight.shape
        assert bias.shape == (n,), "bias / out_features mismatch"
        self.in_features = k
        self.out_features = n
        self.tn, n_pad = _pick_tile(n, _TN_CAP, 128)
        self.tk, k_pad = _pick_tile(k, _TK_CAP, 128)

        w = jnp.asarray(weight, jnp.float32)
        b = jnp.asarray(bias, jnp.float32).reshape(1, n)
        if (n_pad, k_pad) != (n, k):
            w = jnp.pad(w, ((0, n_pad - n), (0, k_pad - k)))
        if n_pad != n:
            b = jnp.pad(b, ((0, 0), (0, n_pad - n)))
        self.weight_padded = jax.device_put(w)
        self.bias_padded = jax.device_put(b)

    def __call__(self, x: jax.Array) -> jax.Array:
        assert x.shape[-1] == self.in_features, "in_features mismatch"
        return _linear_relu_padded(x, self.weight_padded, self.bias_padded,
                                   self.out_features, self.tn, self.tk)


def linear_relu(x: jax.Array, weight: jax.Array, bias: jax.Array) -> jax.Array:
    """One-off functional form (pads the weight per call; prefer PallasLinearReLU)."""
    return PallasLinearReLU(weight, bias)(x)


def _reference(x, weight, bias):
    return jnp.maximum(x @ weight.T + bias, 0.0)


if __name__ == "__main__":
    key = jax.random.PRNGKey(0)

    # --- case 1: LinearReLU(32, 64), batch 8 --------------------------------
    batch, in_features, out_features = 8, 32, 64
    kx, kw, kb, key = jax.random.split(key, 4)
    bound = 1.0 / (in_features ** 0.5)
    weight = jax.random.uniform(
        kw, (out_features, in_features), jnp.float32, -bound, bound)
    bias = jax.random.uniform(kb, (out_features,), jnp.float32, -bound, bound)
    x = jax.random.normal(kx, (batch, in_features), jnp.float32)

    mod = PallasLinearReLU(weight, bias)
    out = jax.block_until_ready(mod(x))
    ref = _reference(x, weight, bias)
    assert out.shape == (batch, out_features)
    assert jnp.allclose(out, ref, atol=1e-5, rtol=1e-5)

    # --- case 2: exercises multi-block grid + non-square / padded shapes ----
    batch2, in2, out2 = 128, 640, 384
    kx2, kw2, kb2, key = jax.random.split(key, 4)
    bound2 = 1.0 / (in2 ** 0.5)
    weight2 = jax.random.uniform(kw2, (out2, in2), jnp.float32, -bound2, bound2)
    bias2 = jax.random.uniform(kb2, (out2,), jnp.float32, -bound2, bound2)
    x2 = jax.random.normal(kx2, (batch2, in2), jnp.float32)

    mod2 = PallasLinearReLU(weight2, bias2)
    out_2 = jax.block_until_ready(mod2(x2))
    ref_2 = _reference(x2, weight2, bias2)
    assert out_2.shape == (batch2, out2)
    assert jnp.allclose(out_2, ref_2, atol=1e-4, rtol=1e-4)

    # Functional one-off path still works.
    out_fn = jax.block_until_ready(linear_relu(x, weight, bias))
    assert jnp.allclose(out_fn, ref, atol=1e-5, rtol=1e-5)

    # TODO(synk): optional bf16 operand path (f32 accumulate) is a numerics
    # trade-off vs. the PyTorch f32 reference, so it is not enabled here.
    print("KERNEL_OK")
</pallas_src>

<mosaic_0001>
module attributes {stable_mosaic.version = 11 : i64} {
  func.func @_linear_relu_kernel(%arg0: i32, %arg1: i32, %arg2: i32, %arg3: memref<8x128xf32, #tpu.memory_space<vmem>>, %arg4: memref<128x128xf32, #tpu.memory_space<vmem>>, %arg5: memref<1x128xf32, #tpu.memory_space<vmem>>, %arg6: memref<8x128xf32, #tpu.memory_space<vmem>>) attributes {dimension_semantics = [#tpu.dimension_semantics<parallel>, #tpu.dimension_semantics<parallel>, #tpu.dimension_semantics<arbitrary>], iteration_bounds = array<i64: 1, 1, 1>, scalar_prefetch = 0 : i64, scratch_operands = 0 : i64, tpu.core_type = #tpu.core_type<tc>, window_params = [{transform_indices = @transform_0, window_bounds = array<i64: 8, 128>}, {transform_indices = @transform_1, window_bounds = array<i64: 128, 128>}, {transform_indices = @transform_2, window_bounds = array<i64: 1, 128>}, {transform_indices = @transform_3, window_bounds = array<i64: 8, 128>}]} {
    %c0_i32 = arith.constant 0 : i32
    %0 = arith.cmpi eq, %arg2, %c0_i32 : i32
    %1 = arith.extui %0 : i1 to i32
    %c0_i32_0 = arith.constant 0 : i32
    %2 = arith.cmpi ne, %1, %c0_i32_0 : i32
    scf.if %2 {
      %c0_10 = arith.constant 0 : index
      %c0_11 = arith.constant 0 : index
      %12 = vector.load %arg5[%c0_10, %c0_11] : memref<1x128xf32, #tpu.memory_space<vmem>>, vector<1x128xf32>
      %13 = vector.shape_cast %12 : vector<1x128xf32> to vector<1x128xf32>
      %14 = vector.broadcast %13 : vector<1x128xf32> to vector<8x128xf32>
      %c0_12 = arith.constant 0 : index
      %c0_13 = arith.constant 0 : index
      %15 = vector.load %arg6[%c0_12, %c0_13] : memref<8x128xf32, #tpu.memory_space<vmem>>, vector<8x128xf32>
      tpu.vector_store %arg6[%c0_12, %c0_13], %14 {strides = array<i32>} : memref<8x128xf32, #tpu.memory_space<vmem>>, vector<8x128xf32>,
    } else {
    }
    %c0 = arith.constant 0 : index
    %c0_1 = arith.constant 0 : index
    %3 = vector.load %arg6[%c0, %c0_1] : memref<8x128xf32, #tpu.memory_space<vmem>>, vector<8x128xf32>
    %c0_2 = arith.constant 0 : index
    %c0_3 = arith.constant 0 : index
    %4 = vector.load %arg3[%c0_2, %c0_3] : memref<8x128xf32, #tpu.memory_space<vmem>>, vector<8x128xf32>
    %c0_4 = arith.constant 0 : index
    %c0_5 = arith.constant 0 : index
    %5 = vector.load %arg4[%c0_4, %c0_5] : memref<128x128xf32, #tpu.memory_space<vmem>>, vector<128x128xf32>
    %cst = arith.constant dense<0.000000e+00> : vector<8x128xf32>
    %6 = tpu.matmul %4, %5, %cst {dimension_numbers = #tpu.dot_dimension_numbers<[1], [1], [0], [0], [0, 0, 1, 0], [], []>} : vector<8x128xf32>, vector<128x128xf32>, vector<8x128xf32> -> vector<8x128xf32>
    %7 = arith.addf %3, %6 : vector<8x128xf32>
    %c0_6 = arith.constant 0 : index
    %c0_7 = arith.constant 0 : index
    %8 = vector.load %arg6[%c0_6, %c0_7] : memref<8x128xf32, #tpu.memory_space<vmem>>, vector<8x128xf32>
    tpu.vector_store %arg6[%c0_6, %c0_7], %7 {strides = array<i32>} : memref<8x128xf32, #tpu.memory_space<vmem>>, vector<8x128xf32>,
    %c0_i32_8 = arith.constant 0 : i32
    %9 = arith.cmpi eq, %arg2, %c0_i32_8 : i32
    %10 = arith.extui %9 : i1 to i32
    %c0_i32_9 = arith.constant 0 : i32
    %11 = arith.cmpi ne, %10, %c0_i32_9 : i32
    scf.if %11 {
      %c0_10 = arith.constant 0 : index
      %c0_11 = arith.constant 0 : index
      %12 = vector.load %arg6[%c0_10, %c0_11] : memref<8x128xf32, #tpu.memory_space<vmem>>, vector<8x128xf32>
      %cst_12 = arith.constant 0.000000e+00 : f32
      %13 = vector.broadcast %cst_12 : f32 to vector<8x128xf32>
      %14 = arith.maximumf %12, %13 : vector<8x128xf32>
      %c0_13 = arith.constant 0 : index
      %c0_14 = arith.constant 0 : index
      %15 = vector.load %arg6[%c0_13, %c0_14] : memref<8x128xf32, #tpu.memory_space<vmem>>, vector<8x128xf32>
      tpu.vector_store %arg6[%c0_13, %c0_14], %14 {strides = array<i32>} : memref<8x128xf32, #tpu.memory_space<vmem>>, vector<8x128xf32>,
    } else {
    }
    return
  }
  func.func @transform_0(%arg0: i32, %arg1: i32, %arg2: i32) -> (i32, i32) {
    %c0_i32 = arith.constant 0 : i32
    return %arg0, %arg2 : i32, i32
  }
  func.func @transform_1(%arg0: i32, %arg1: i32, %arg2: i32) -> (i32, i32) {
    %c0_i32 = arith.constant 0 : i32
    return %arg1, %arg2 : i32, i32
  }
  func.func @transform_2(%arg0: i32, %arg1: i32, %arg2: i32) -> (i32, i32) {
    %c0_i32 = arith.constant 0 : i32
    %c0_i32_0 = arith.constant 0 : i32
    return %c0_i32, %arg1 : i32, i32
  }
  func.func @transform_3(%arg0: i32, %arg1: i32, %arg2: i32) -> (i32, i32) {
    %c0_i32 = arith.constant 0 : i32
    return %arg0, %arg1 : i32, i32
  }
}

</mosaic_0001>

<llo_original>
// kernel: _linear_relu_padded.1
$region0: #{_linear_relu_padded.1}
  #allocation0 [shape = 'u32[]', space=smem, size = 0x4, offset = 0x4, fixed_abs, tag = 'smem constant byte address 0x4 - core index']
  #allocation1 [shape = 'u32[144,128]{1,0:T(1,128)}', space=vmem, size = 0x12000, scoped, tag = 'internal scratch']
  %s0 = inlined_call_operand.vmem [shape: f32[8,128], index: 0, kind: input, shape index: {}]
  %s1 = inlined_call_operand.hbm [shape: f32[128,128], index: 1, kind: input, shape index: {}]
  %s2 = inlined_call_operand.vmem [shape: f32[1,128], index: 2, kind: input, shape index: {}]
  %s3 = inlined_call_operand.hbm [shape: f32[8,128], index: 3, kind: output, shape index: {}]
  %s4 = sld [smem:[#allocation0]]
  $region34: #{_linear_relu_padded.1} parent=0
    _
  %s6 = ssub.s32 1, %s4
  %s7 = scalar_select 0, %s6, %s4
  $region1: #{_linear_relu_padded.1} parent=0
    #allocation2 [shape = 'u8[65536]{0}', space=vmem, size = 0x10000, scoped, tag = 'input window, operand 1, single buffered']
    #allocation3 [shape = 's32[1]{0}', space=sflag, size = 0x4, scoped, tag = 'scoped memory for _linear_relu_padded.1']
    #allocation4 [shape = 's32[1]{0}', space=sflag, size = 0x4, scoped, tag = 'scoped memory for _linear_relu_padded.1']
    #allocation5 [shape = 'u8[4096]{0}', space=vmem, size = 0x1000, scoped, tag = 'output window, operand 0, single buffered']
    %8 = vsyncpa [#allocation3], 0
    %9 = vsyncpa [#allocation4], 0
    // Predicated region
    $region2: #{_linear_relu_padded.1} parent=1 // pred_check
      _
    $region3: #{_linear_relu_padded.1} parent=1 // pred_check_branch
      %11 = sbr.rel (0) target = $region5
    $region4: #{_linear_relu_padded.1} parent=1 // pred_region
      _
    $region5: #{_linear_relu_padded.1} parent=1 // pred_fallthru
      _
    // Predicated region
    $region6: #{_linear_relu_padded.1} parent=1 // pred_check
      _
    $region7: #{_linear_relu_padded.1} parent=1 // pred_check_branch
      %13 = sbr.rel (0) target = $region9
    $region8: #{_linear_relu_padded.1} parent=1 // pred_region
      %s15 = ssub.s32 2048, 2048
      %16 = vsyncadd [#allocation3], %s15
      %s17 = sshll.u32 [#allocation2], 4
      %s18 = int_to_ptr.vmem [resolvable:$true] %s17
      %23 = dma.hbm_to_vmem [thread:$0]  %s1, 2048, %s18, [#allocation3], 128, 128, 8
    $region9: #{_linear_relu_padded.1} parent=1 // pred_fallthru
      _
    // Predicated region
    $region10: #{_linear_relu_padded.1} parent=1 // pred_check
      _
    $region11: #{_linear_relu_padded.1} parent=1 // pred_check_branch
      %25 = sbr.rel (0) target = $region13
    $region12: #{_linear_relu_padded.1} parent=1 // pred_region
      _
    $region13: #{_linear_relu_padded.1} parent=1 // pred_fallthru
      _
    // Predicated region
    $region14: #{_linear_relu_padded.1} parent=1 // pred_check
      _
    $region15: #{_linear_relu_padded.1} parent=1 // pred_check_branch
      %27 = sbr.rel (0) target = $region17
    $region16: #{_linear_relu_padded.1} parent=1 // pred_region
      %28 = dma.done [#allocation3], 2048
    $region17: #{_linear_relu_padded.1} parent=1 // pred_fallthru
      _
    %p29 = scmp.eq.s32.totalorder 0, 0
    // Predicated region
    $region18: #{_linear_relu_padded.1} parent=1 // pred_check
      %p30 = pneg %p29
    $region19: #{_linear_relu_padded.1} parent=1 // pred_check_branch
      %32 = sbr.rel (%p30) target = $region21
    $region20: #{_linear_relu_padded.1} parent=1 // pred_region
      %v33 = vld [vmem:[%s2] sm:$0x1]
      %v35 = vlaneseq
      %v36 = vshrl.u32 %v35, 7
      %v37 = vsub.s32 0, %v36
      %v38 = vrot.slane %v33, %v37
      %40 = vst [vmem:[#allocation5] sm:$0xff] %v38
    $region21: #{_linear_relu_padded.1} parent=1 // pred_fallthru
      _
    %v41 = vld [vmem:[#allocation5] sm:$0xff]
    %v42 = vld [vmem:[%s0] sm:$0xff]
    %v43 = vld [vmem:[#allocation2] sm:$0xff]
    %v44 = vld [vmem:[#allocation2 + $0x8] sm:$0xff]
    %v45 = vld [vmem:[#allocation2 + $0x10] sm:$0xff]
    %v46 = vld [vmem:[#allocation2 + $0x18] sm:$0xff]
    %v47 = vld [vmem:[#allocation2 + $0x20] sm:$0xff]
    %v48 = vld [vmem:[#allocation2 + $0x28] sm:$0xff]
    %v49 = vld [vmem:[#allocation2 + $0x30] sm:$0xff]
    %v50 = vld [vmem:[#allocation2 + $0x38] sm:$0xff]
    %v51 = vld [vmem:[#allocation2 + $0x40] sm:$0xff]
    %v52 = vld [vmem:[#allocation2 + $0x48] sm:$0xff]
    %v53 = vld [vmem:[#allocation2 + $0x50] sm:$0xff]
    %v54 = vld [vmem:[#allocation2 + $0x58] sm:$0xff]
    %v55 = vld [vmem:[#allocation2 + $0x60] sm:$0xff]
    %v56 = vld [vmem:[#allocation2 + $0x68] sm:$0xff]
    %v57 = vld [vmem:[#allocation2 + $0x70] sm:$0xff]
    %v58 = vld [vmem:[#allocation2 + $0x78] sm:$0xff]
    %59 = vmatprep.subr.mxu0 0.0
    %60 = vmatpush1.xpose.msra.mxu0 %v43
    %61 = vmatprep.subr.mxu0 0.0
    %62 = vmatpush1.xpose.msra.mxu0 %v44
    %63 = vmatprep.subr.mxu0 0.0
    %64 = vmatpush1.xpose.msra.mxu0 %v45
    %65 = vmatprep.subr.mxu0 0.0
    %66 = vmatpush1.xpose.msra.mxu0 %v46
    %67 = vmatprep.subr.mxu0 0.0
    %68 = vmatpush1.xpose.msra.mxu0 %v47
    %69 = vmatprep.subr.mxu0 0.0
    %70 = vmatpush1.xpose.msra.mxu0 %v48
    %71 = vmatprep.subr.mxu0 0.0
    %72 = vmatpush1.xpose.msra.mxu0 %v49
    %73 = vmatprep.subr.mxu0 0.0
    %74 = vmatpush1.xpose.msra.mxu0 %v50
    %75 = vmatprep.subr.mxu0 0.0
    %76 = vmatpush1.xpose.msra.mxu0 %v51
    %77 = vmatprep.subr.mxu0 0.0
    %78 = vmatpush1.xpose.msra.mxu0 %v52
    %79 = vmatprep.subr.mxu0 0.0
    %80 = vmatpush1.xpose.msra.mxu0 %v53
    %81 = vmatprep.subr.mxu0 0.0
    %82 = vmatpush1.xpose.msra.mxu0 %v54
    %83 = vmatprep.subr.mxu0 0.0
    %84 = vmatpush1.xpose.msra.mxu0 %v55
    %85 = vmatprep.subr.mxu0 0.0
    %86 = vmatpush1.xpose.msra.mxu0 %v56
    %87 = vmatprep.subr.mxu0 0.0
    %88 = vmatpush1.xpose.msra.mxu0 %v57
    %89 = vmatprep.subr.mxu0 0.0
    %90 = vmatpush1.xpose.msra.mxu0 %v58
    %91 = vmatprep.subr.mxu0 0.0
    %92 = vmatpush1.xpose.msra.mxu0 0.0
    %93 = vmatprep.subr.mxu0 0.0
    %94 = vmatpush1.xpose.msra.mxu0 0.0
    %95 = vmatprep.subr.mxu0 0.0
    %96 = vmatpush1.xpose.msra.mxu0 0.0
    %97 = vmatprep.subr.mxu0 0.0
    %98 = vmatpush1.xpose.msra.mxu0 0.0
    %99 = vmatprep.subr.mxu0 0.0
    %100 = vmatpush1.xpose.msra.mxu0 0.0
    %101 = vmatprep.subr.mxu0 0.0
    %102 = vmatpush1.xpose.msra.mxu0 0.0
    %103 = vmatprep.subr.mxu0 0.0
    %104 = vmatpush1.xpose.msra.mxu0 0.0
    %105 = vmatprep.subr.mxu0 0.0
    %106 = vmatpush1.xpose.msra.mxu0 0.0
    %107 = vmatprep.subr.mxu0 0.0
    %108 = vmatpush1.xpose.msra.mxu0 0.0
    %109 = vmatprep.subr.mxu0 0.0
    %110 = vmatpush1.xpose.msra.mxu0 0.0
    %111 = vmatprep.subr.mxu0 0.0
    %112 = vmatpush1.xpose.msra.mxu0 0.0
    %113 = vmatprep.subr.mxu0 0.0
    %114 = vmatpush1.xpose.msra.mxu0 0.0
    %115 = vmatprep.subr.mxu0 0.0
    %116 = vmatpush1.xpose.msra.mxu0 0.0
    %117 = vmatprep.subr.mxu0 0.0
    %118 = vmatpush1.xpose.msra.mxu0 0.0
    %119 = vmatprep.subr.mxu0 0.0
    %120 = vmatpush1.xpose.msra.mxu0 0.0
    %121 = vmatprep.subr.mxu0 0.0
    %122 = vmatpush1.xpose.msra.mxu0 0.0
    %123 = vmatprep.mubr.f32.mxu0 0.0
    %124 = vmatmul.mubr.f32.gmra.mrb[0].mxu0 %v42
    %v125 = vpop.f32.mrb[0].mxu0
    %v126 = vadd.f32 0.0, %v125
    %v127 = vpop.f32.mrb[0].mxu0
    %128 = vdwg.mxu0
    %v129 = vadd.f32 %v41, %v126
    %130 = vst [vmem:[#allocation5] sm:$0xff] %v129
    // Predicated region
    $region22: #{_linear_relu_padded.1} parent=1 // pred_check
      %p131 = pneg %p29
    $region23: #{_linear_relu_padded.1} parent=1 // pred_check_branch
      %133 = sbr.rel (%p131) target = $region25
    $region24: #{_linear_relu_padded.1} parent=1 // pred_region
      %v134 = vld [vmem:[#allocation5] sm:$0xff]
      %v135 = vmax.f32 %v134, 0.0
      %136 = vst [vmem:[#allocation5] sm:$0xff] %v135
    $region25: #{_linear_relu_padded.1} parent=1 // pred_fallthru
      _
    // Predicated region
    $region26: #{_linear_relu_padded.1} parent=1 // pred_check
      _
    $region27: #{_linear_relu_padded.1} parent=1 // pred_check_branch
      %138 = sbr.rel (0) target = $region29
    $region28: #{_linear_relu_padded.1} parent=1 // pred_region
      %s140 = ssub.s32 128, 128
      %141 = vsyncadd [#allocation4], %s140
      %s143 = sshll.u32 [#allocation5], 4
      %s144 = int_to_ptr.vmem [resolvable:$true] %s143
      %146 = dma.vmem_to_hbm [thread:$0]  %s144, 128, %s3, [#allocation4]
    $region29: #{_linear_relu_padded.1} parent=1 // pred_fallthru
      _
    // Predicated region
    $region30: #{_linear_relu_padded.1} parent=1 // pred_check
      _
    $region31: #{_linear_relu_padded.1} parent=1 // pred_check_branch
      %148 = sbr.rel (0) target = $region33
    $region32: #{_linear_relu_padded.1} parent=1 // pred_region
      %149 = dma.done [#allocation4], 128
    $region33: #{_linear_relu_padded.1} parent=1 // pred_fallthru
      _
    %150 = vsyncpa [#allocation3], 1
    %151 = vsyncpa [#allocation4], 1

</llo_original>
